<compile_context>
chip_gen: v6e
topology: v6e:2x2x1
jax: 0.10.0
libtpu: 0.0.40
codegen_flags: <defaults>
</compile_context>

<pallas_src>
import functools

import jax
import jax.numpy as jnp
from jax.experimental import pallas as pl
from jax.experimental.pallas import tpu as pltpu


def _transition_kernel(x_ref, scale_ref, shift_ref, w_ref, out_ref, *,
                       c_in, collapse_taps):
    """BN + ReLU (VPU, f32) -> 2x2 avg-pool + 1x1 conv (MXU), channel-major.

    x_ref:     (1, K, TM)  bf16, K = 4*C_in, rows ordered tap-major/channel-minor
    scale_ref: (K, 1)      f32   BN scale = gamma / sqrt(var + eps), tiled 4x
    shift_ref: (K, 1)      f32   BN shift = beta - mean * scale,     tiled 4x
    w_ref:     (Cop, Kw)   bf16  conv weight; Kw = C_in if taps collapsed on
                                 the VPU, else 4*C_in with 0.25 pre-folded
    out_ref:   (1, Cop, TM)      channel-major output block
    """
    # BN/ReLU in f32 on the VPU; (K,1) scale/shift broadcast along lanes.
    a = jnp.maximum(
        x_ref[0].astype(jnp.float32) * scale_ref[...] + shift_ref[...], 0.0)
    if collapse_taps:
        # Sum the 4 pooling taps on the VPU (sublane-aligned slices) so the
        # MXU matmul shrinks to (Cop, C_in) @ (C_in, TM).
        a = 0.25 * (a[0 * c_in:1 * c_in, :] + a[1 * c_in:2 * c_in, :]
                    + a[2 * c_in:3 * c_in, :] + a[3 * c_in:4 * c_in, :])
    # Weight-stationary bf16 MXU matmul, f32 accumulation, channel-major out.
    out_ref[0] = jnp.dot(
        w_ref[...], a.astype(w_ref.dtype),
        preferred_element_type=jnp.float32).astype(out_ref.dtype)


def _round_up(v, m):
    return ((v + m - 1) // m) * m


def _cdiv(a, b):
    return -(-a // b)


def _vmem_config():
    """Generation-aware VMEM budget / limit / input pipeline depth."""
    default_cap = 64 * 1024 * 1024            # conservative: v7x per-TC VMEM
    try:
        info = pltpu.get_tpu_info()
        cap = int(getattr(info, "vmem_capacity_bytes", default_cap)) or default_cap
    except Exception:
        cap = default_cap
    budget = int(cap * 0.70)                  # tile-sizing budget
    limit = min(int(cap * 0.85), cap - 8 * 1024 * 1024)   # Mosaic scoped limit
    n_buf_in = 3 if cap >= 96 * 1024 * 1024 else 2        # deeper pipe on 128MiB parts
    return budget, limit, n_buf_in


def _choose_tile_m(m_sp, n_batch, k, kw, cop, out_bytes, budget, n_buf_in,
                   collapse, cap=2048):
    """Largest spatial tile (lane dim) whose buffered slabs + temps fit budget."""
    const_b = 2 * cop * kw * 2                # bf16 weight, double-buffered
    const_b += 2 * 2 * k * 128 * 4            # (K,1) f32 scale/shift, lane-padded, x2 bufs
    per_col = (n_buf_in * k * 2               # bf16 input slab(s)
               + 2 * cop * out_bytes          # output slabs (double-buffered)
               + k * 4                        # f32 BN/ReLU activation temp
               + (kw * 4 if collapse else 0)  # collapsed f32 taps
               + kw * 2                       # bf16 MXU operand
               + cop * 4                      # f32 matmul result
               + cop * out_bytes)             # cast result
    tm = (budget - const_b) // per_col
    tm = int(min(tm, cap, m_sp))
    if tm >= m_sp:
        tm = m_sp
    else:
        tm = max(128, (tm // 128) * 128)      # lane-dense stores: 128-multiples
        tm = min(tm, m_sp)
    # Keep >= 2 grid blocks so both v7x TensorCores get work.
    if n_batch * _cdiv(m_sp, tm) < 2 and m_sp > 128:
        tm = min(m_sp, max(128, _round_up(_cdiv(m_sp, 2), 128)))
    return int(tm)


def transition_layer(x, gamma, beta, running_mean, running_var, conv_w,
                     eps=1e-5, mxu_dtype=jnp.bfloat16):
    """Forward of _TransitionLayer.  x: (N, C_in, H, W) -> (N, C_out, H/2, W/2)."""
    N, C_in, H, W = x.shape
    C_out = conv_w.shape[0]
    assert H % 2 == 0 and W % 2 == 0
    Ho, Wo = H // 2, W // 2
    M_sp = Ho * Wo
    K = 4 * C_in
    Cop = _round_up(C_out, 128)               # lane-dense 128; don't pad to 256
    out_dtype = x.dtype

    collapse_taps = (C_in % 8 == 0)           # sublane-aligned tap slices on VPU
    Kw = C_in if collapse_taps else K

    # BN affine parameters (eval-mode / running stats), tiled over the 4 taps,
    # laid out as columns (channel along sublanes) for the channel-major kernel.
    scale = (gamma / jnp.sqrt(running_var + eps)).astype(jnp.float32)
    shift = (beta - running_mean * scale).astype(jnp.float32)
    scale4 = jnp.tile(scale, 4).reshape(K, 1)
    shift4 = jnp.tile(shift, 4).reshape(K, 1)

    # 1x1 conv weight (C_out, C_in, 1, 1) -> (C_out, C_in), zero-padded to Cop
    # rows.  Stacked-tap path folds the 0.25 pooling factor into 4 copies so
    # the 2x2-average sum rides the MXU; collapse path keeps a single copy.
    w_oc = conv_w.reshape(C_out, C_in).astype(jnp.float32)
    w_k = w_oc if collapse_taps else jnp.tile(0.25 * w_oc, (1, 4))
    w_k = jnp.pad(w_k, ((0, Cop - C_out), (0, 0))).astype(mxu_dtype)

    # Single layout-glue pass, done in bf16 (halves this pass and the kernel's
    # input DMA): NCHW -> (N, 4*C_in, Ho*Wo).  Row index = tap*C_in + c with
    # tap = dh*2 + dw; column index = ho*Wo + wo.
    x_t = (x.astype(mxu_dtype)
            .reshape(N, C_in, Ho, 2, Wo, 2)
            .transpose(0, 3, 5, 1, 2, 4)
            .reshape(N, K, M_sp))

    budget, vmem_limit, n_buf_in = _vmem_config()
    out_bytes = jnp.dtype(out_dtype).itemsize
    TM = _choose_tile_m(M_sp, N, K, Kw, Cop, out_bytes, budget, n_buf_in,
                        collapse_taps)
    grid = (N, pl.cdiv(M_sp, TM))             # ragged last tile is masked

    x_idx = lambda n, i: (n, 0, i)
    const_idx = lambda n, i: (0, 0)
    if n_buf_in > 2:
        try:                                  # deeper input pipelining (v5e/v6e)
            x_spec = pl.BlockSpec((1, K, TM), x_idx,
                                  pipeline_mode=pl.Buffered(n_buf_in))
        except TypeError:
            x_spec = pl.BlockSpec((1, K, TM), x_idx)
    else:
        x_spec = pl.BlockSpec((1, K, TM), x_idx)

    kernel = functools.partial(_transition_kernel, c_in=C_in,
                               collapse_taps=collapse_taps)

    out_flat = pl.pallas_call(
        kernel,
        out_shape=jax.ShapeDtypeStruct((N, Cop, M_sp), out_dtype),
        grid_spec=pltpu.PrefetchScalarGridSpec(
            num_scalar_prefetch=0,
            grid=grid,
            in_specs=[
                x_spec,
                pl.BlockSpec((K, 1), const_idx),
                pl.BlockSpec((K, 1), const_idx),
                pl.BlockSpec((Cop, Kw), const_idx),
            ],
            out_specs=pl.BlockSpec((1, Cop, TM), x_idx),
        ),
        compiler_params=pltpu.CompilerParams(
            dimension_semantics=("parallel", "parallel"),
            vmem_limit_bytes=vmem_limit),
    )(x_t, scale4, shift4, w_k)

    # Output is already channel-major: only slice off the Cop padding and
    # reshape (no output-side transpose HBM pass).
    return out_flat[:, :C_out, :].reshape(N, C_out, Ho, Wo)


def _reference(x, gamma, beta, running_mean, running_var, conv_w, eps=1e-5):
    """Pure-JAX (f32) reference for correctness checking."""
    scale = gamma / jnp.sqrt(running_var + eps)
    shift = beta - running_mean * scale
    a = jnp.maximum(x * scale[None, :, None, None] + shift[None, :, None, None], 0.0)
    conv = jnp.einsum('nchw,oc->nohw', a, conv_w.reshape(conv_w.shape[0], -1))
    N, Co, H, W = conv.shape
    return conv.reshape(N, Co, H // 2, 2, W // 2, 2).mean(axis=(3, 5))


if __name__ == "__main__":
    def _run_case(seed, N, C_in, H, W, C_out):
        key = jax.random.PRNGKey(seed)
        k1, k2, k3, k4, k5, k6 = jax.random.split(key, 6)
        x = jax.random.normal(k1, (N, C_in, H, W), dtype=jnp.float32)
        # Deterministic synthetic parameters (shapes dictated by module init).
        gamma = jax.random.normal(k2, (C_in,), dtype=jnp.float32) * 0.1 + 1.0
        beta = jax.random.normal(k3, (C_in,), dtype=jnp.float32) * 0.1
        mean = jax.random.normal(k4, (C_in,), dtype=jnp.float32) * 0.1
        var = jnp.abs(jax.random.normal(k5, (C_in,), dtype=jnp.float32)) * 0.1 + 1.0
        w = jax.random.normal(k6, (C_out, C_in, 1, 1), dtype=jnp.float32) * 0.1

        out = jax.block_until_ready(
            transition_layer(x, gamma, beta, mean, var, w))
        ref = _reference(x, gamma, beta, mean, var, w)
        assert out.shape == (N, C_out, H // 2, W // 2), out.shape
        # bf16 input DMA + bf16 MXU operands with f32 accumulation.
        err = float(jnp.max(jnp.abs(out - ref)))
        assert jnp.allclose(out, ref, atol=3e-2, rtol=3e-2), err

    # Stacked-weight path (C_in not a multiple of 8).
    _run_case(0, N=2, C_in=4, H=16, W=16, C_out=2)
    # VPU tap-collapse path (C_in multiple of 8).
    _run_case(1, N=1, C_in=8, H=16, W=16, C_out=4)

    print("KERNEL_OK")
</pallas_src>

<mosaic_0001>
module attributes {stable_mosaic.version = 11 : i64} {
  func.func @_transition_kernel(%arg0: i32, %arg1: i32, %arg2: memref<1x16x64xbf16, #tpu.memory_space<vmem>>, %arg3: memref<16x1xf32, #tpu.memory_space<vmem>>, %arg4: memref<16x1xf32, #tpu.memory_space<vmem>>, %arg5: memref<128x16xbf16, #tpu.memory_space<vmem>>, %arg6: memref<1x128x64xf32, #tpu.memory_space<vmem>>) attributes {dimension_semantics = [#tpu.dimension_semantics<parallel>, #tpu.dimension_semantics<parallel>], iteration_bounds = array<i64: 2, 1>, scalar_prefetch = 0 : i64, scratch_operands = 0 : i64, tpu.core_type = #tpu.core_type<tc>, window_params = [{transform_indices = @transform_0, window_bounds = array<i64: 1, 16, 64>}, {pipeline_mode = #tpu.pipeline_mode<synchronous>, transform_indices = @transform_1, window_bounds = array<i64: 16, 1>}, {pipeline_mode = #tpu.pipeline_mode<synchronous>, transform_indices = @transform_2, window_bounds = array<i64: 16, 1>}, {pipeline_mode = #tpu.pipeline_mode<synchronous>, transform_indices = @transform_3, window_bounds = array<i64: 128, 16>}, {transform_indices = @transform_4, window_bounds = array<i64: 1, 128, 64>}]} {
    %c0 = arith.constant 0 : index
    %c0_0 = arith.constant 0 : index
    %c0_1 = arith.constant 0 : index
    %0 = vector.load %arg2[%c0, %c0_0, %c0_1] : memref<1x16x64xbf16, #tpu.memory_space<vmem>>, vector<1x16x64xbf16>
    %1 = vector.shape_cast %0 : vector<1x16x64xbf16> to vector<16x64xbf16>
    %2 = arith.extf %1 : vector<16x64xbf16> to vector<16x64xf32>
    %c0_2 = arith.constant 0 : index
    %c0_3 = arith.constant 0 : index
    %3 = vector.load %arg3[%c0_2, %c0_3] : memref<16x1xf32, #tpu.memory_space<vmem>>, vector<16x1xf32>
    %4 = vector.broadcast %3 : vector<16x1xf32> to vector<16x64xf32>
    %5 = arith.mulf %2, %4 : vector<16x64xf32>
    %c0_4 = arith.constant 0 : index
    %c0_5 = arith.constant 0 : index
    %6 = vector.load %arg4[%c0_4, %c0_5] : memref<16x1xf32, #tpu.memory_space<vmem>>, vector<16x1xf32>
    %7 = vector.broadcast %6 : vector<16x1xf32> to vector<16x64xf32>
    %8 = arith.addf %5, %7 : vector<16x64xf32>
    %cst = arith.constant 0.000000e+00 : f32
    %9 = vector.broadcast %cst : f32 to vector<16x64xf32>
    %10 = arith.maximumf %8, %9 : vector<16x64xf32>
    %c0_6 = arith.constant 0 : index
    %c0_7 = arith.constant 0 : index
    %11 = vector.load %arg5[%c0_6, %c0_7] : memref<128x16xbf16, #tpu.memory_space<vmem>>, vector<128x16xbf16>
    %12 = arith.truncf %10 : vector<16x64xf32> to vector<16x64xbf16>
    %cst_8 = arith.constant dense<0.000000e+00> : vector<128x64xf32>
    %13 = tpu.matmul %11, %12, %cst_8 {dimension_numbers = #tpu.dot_dimension_numbers<[1], [0], [0], [1], [0, 0, 1, 1], [], []>} : vector<128x16xbf16>, vector<16x64xbf16>, vector<128x64xf32> -> vector<128x64xf32>
    %c0_9 = arith.constant 0 : index
    %c0_10 = arith.constant 0 : index
    %c0_11 = arith.constant 0 : index
    %14 = vector.load %arg6[%c0_9, %c0_10, %c0_11] : memref<1x128x64xf32, #tpu.memory_space<vmem>>, vector<1x128x64xf32>
    %15 = vector.shape_cast %14 : vector<1x128x64xf32> to vector<128x64xf32>
    %16 = vector.shape_cast %13 : vector<128x64xf32> to vector<1x128x64xf32>
    tpu.vector_store %arg6[%c0_9, %c0_10, %c0_11], %16 {strides = array<i32>} : memref<1x128x64xf32, #tpu.memory_space<vmem>>, vector<1x128x64xf32>,
    return
  }
  func.func @transform_0(%arg0: i32, %arg1: i32) -> (i32, i32, i32) {
    %c0_i32 = arith.constant 0 : i32
    %c0_i32_0 = arith.constant 0 : i32
    return %arg0, %c0_i32, %arg1 : i32, i32, i32
  }
  func.func @transform_1(%arg0: i32, %arg1: i32) -> (i32, i32) {
    %c0_i32 = arith.constant 0 : i32
    %c0_i32_0 = arith.constant 0 : i32
    %c0_i32_1 = arith.constant 0 : i32
    return %c0_i32, %c0_i32_0 : i32, i32
  }
  func.func @transform_2(%arg0: i32, %arg1: i32) -> (i32, i32) {
    %c0_i32 = arith.constant 0 : i32
    %c0_i32_0 = arith.constant 0 : i32
    %c0_i32_1 = arith.constant 0 : i32
    return %c0_i32, %c0_i32_0 : i32, i32
  }
  func.func @transform_3(%arg0: i32, %arg1: i32) -> (i32, i32) {
    %c0_i32 = arith.constant 0 : i32
    %c0_i32_0 = arith.constant 0 : i32
    %c0_i32_1 = arith.constant 0 : i32
    return %c0_i32, %c0_i32_0 : i32, i32
  }
  func.func @transform_4(%arg0: i32, %arg1: i32) -> (i32, i32, i32) {
    %c0_i32 = arith.constant 0 : i32
    %c0_i32_0 = arith.constant 0 : i32
    return %arg0, %c0_i32, %arg1 : i32, i32, i32
  }
}

</mosaic_0001>

<llo_original>
// kernel: tpu_custom_call.1
$region0: #{tpu_custom_call.1}
  #allocation0 [shape = 'u32[]', space=smem, size = 0x4, offset = 0x4, fixed_abs, tag = 'smem constant byte address 0x4 - core index']
  #allocation1 [shape = 'u32[144,128]{1,0:T(1,128)}', space=vmem, size = 0x12000, scoped, tag = 'internal scratch']
  %s0 = inlined_call_operand.vmem [shape: bf16[2,16,64], index: 0, kind: input, shape index: {}]
  %s1 = inlined_call_operand.vmem [shape: f32[16,1], index: 1, kind: input, shape index: {}]
  %s2 = inlined_call_operand.vmem [shape: f32[16,1], index: 2, kind: input, shape index: {}]
  %s3 = inlined_call_operand.vmem [shape: bf16[128,16], index: 3, kind: input, shape index: {}]
  %s4 = inlined_call_operand.vmem [shape: f32[2,128,64], index: 4, kind: output, shape index: {}]
  %s5 = sld [smem:[#allocation0]]
  $region49: #{tpu_custom_call.1} parent=0
    _
  %s7 = ssub.s32 1, %s5
  %s8 = scalar_select 0, %s7, %s5
  loop: start=0, step=1, limit=4
  $region2: #{tpu_custom_call.1} parent=0 // loop_pre_header
    _
  $region3: #{tpu_custom_call.1} parent=0 // loop_header
    %s10 = sphi 0, %s14
    %p11 = scmp.ge.s32.totalorder %s10, 4
    %s17 = sphi 0, %s29
    %s18 = sphi 0, %s25
    %s19 = sphi 0, %s17
    %s20 = sphi 0, %s18
    %s21 = sphi 0, %s19
    %s22 = sphi 0, %s20
    %s34 = sphi 0, %s36
    %s37 = sphi 0, %s34
    %s38 = sphi 0, %s37
    %s54 = sphi 0, %s38
    %s58 = sphi 0, %s58
    %s60 = sphi 0, %s58
    %s61 = sphi 0, %s60
    %s75 = sphi 0, %s61
    %s79 = sphi 0, %s79
    %s81 = sphi 0, %s79
    %s82 = sphi 0, %s81
    %s96 = sphi 0, %s82
    %s100 = sphi 0, %s100
    %s102 = sphi 0, %s100
    %s103 = sphi 0, %s102
    %s117 = sphi 0, %s103
    %s125 = sphi 0, %s127
    %s128 = sphi 0, %s125
    %s129 = sphi 0, %s128
    %s145 = sphi 0, %s129
  $region4: #{tpu_custom_call.1} parent=0 // loop_header_branch
    %13 = sbr.rel (%p11) target = $region8
  $region5: #{tpu_custom_call.1} parent=0 // loop_body
    %s15 = ssub.s32 %s10, 1
    %s16 = ssub.s32 %s10, 2
    %s23 = sadd.s32 1, %s18
    %p24 = scmp.ge.s32.totalorder %s23, 1
    %s25 = scalar_select %p24, 0, %s23
    %s26 = sadd.s32 1, %s17
    %s27 = scalar_select %p24, %s26, %s17
    %p28 = scmp.ge.s32.totalorder %s27, 2
    %s29 = scalar_select %p28, 0, %s27
    %s30 = ssub.s32 %s17, %s29
    %s31 = ssub.s32 %s18, %s25
    %s32 = sor.u32 %s30, %s31
    %p33 = scmp.eq.s32.totalorder %s32, 0
    %s35 = sadd.s32 %s34, 1
    %s36 = scalar_select %p33, %s34, %s35
    %p39 = pneg %p33
    %p40 = scmp.eq.s32.totalorder %s10, 1
    %p41 = por %p39, %p40
    %p42 = scmp.ne.s32.totalorder %s34, %s37
    %p43 = scmp.eq.s32.totalorder %s10, 0
    %p44 = por %p42, %p43
    %p45 = scmp.ne.s32.totalorder %s34, %s37
    %p46 = scmp.eq.s32.totalorder %s15, 1
    %p47 = por %p45, %p46
    %p48 = scmp.ne.s32.totalorder %s37, %s38
    %p49 = scmp.eq.s32.totalorder %s15, 0
    %p50 = por %p48, %p49
    %p51 = scmp.ne.s32.totalorder %s37, %s38
    %p52 = scmp.eq.s32.totalorder %s16, 1
    %p53 = por %p51, %p52
    %p55 = scmp.ne.s32.totalorder %s38, %s54
    %p56 = scmp.eq.s32.totalorder %s16, 0
    %p57 = por %p55, %p56
    %s59 = sadd.s32 %s58, 1
    %p62 = scmp.eq.s32.totalorder %s10, 1
    %p63 = scmp.ne.s32.totalorder %s58, %s60
    %p64 = scmp.eq.s32.totalorder %s10, 0
    %p65 = por %p63, %p64
    %p66 = scmp.ne.s32.totalorder %s58, %s60
    %p67 = scmp.eq.s32.totalorder %s15, 1
    %p68 = por %p66, %p67
    %p69 = scmp.ne.s32.totalorder %s60, %s61
    %p70 = scmp.eq.s32.totalorder %s15, 0
    %p71 = por %p69, %p70
    %p72 = scmp.ne.s32.totalorder %s60, %s61
    %p73 = scmp.eq.s32.totalorder %s16, 1
    %p74 = por %p72, %p73
    %p76 = scmp.ne.s32.totalorder %s61, %s75
    %p77 = scmp.eq.s32.totalorder %s16, 0
    %p78 = por %p76, %p77
    %s80 = sadd.s32 %s79, 1
    %p83 = scmp.eq.s32.totalorder %s10, 1
    %p84 = scmp.ne.s32.totalorder %s79, %s81
    %p85 = scmp.eq.s32.totalorder %s10, 0
    %p86 = por %p84, %p85
    %p87 = scmp.ne.s32.totalorder %s79, %s81
    %p88 = scmp.eq.s32.totalorder %s15, 1
    %p89 = por %p87, %p88
    %p90 = scmp.ne.s32.totalorder %s81, %s82
    %p91 = scmp.eq.s32.totalorder %s15, 0
    %p92 = por %p90, %p91
    %p93 = scmp.ne.s32.totalorder %s81, %s82
    %p94 = scmp.eq.s32.totalorder %s16, 1
    %p95 = por %p93, %p94
    %p97 = scmp.ne.s32.totalorder %s82, %s96
    %p98 = scmp.eq.s32.totalorder %s16, 0
    %p99 = por %p97, %p98
    %s101 = sadd.s32 %s100, 1
    %p104 = scmp.eq.s32.totalorder %s10, 1
    %p105 = scmp.ne.s32.totalorder %s100, %s102
    %p106 = scmp.eq.s32.totalorder %s10, 0
    %p107 = por %p105, %p106
    %p108 = scmp.ne.s32.totalorder %s100, %s102
    %p109 = scmp.eq.s32.totalorder %s15, 1
    %p110 = por %p108, %p109
    %p111 = scmp.ne.s32.totalorder %s102, %s103
    %p112 = scmp.eq.s32.totalorder %s15, 0
    %p113 = por %p111, %p112
    %p114 = scmp.ne.s32.totalorder %s102, %s103
    %p115 = scmp.eq.s32.totalorder %s16, 1
    %p116 = por %p114, %p115
    %p118 = scmp.ne.s32.totalorder %s103, %s117
    %p119 = scmp.eq.s32.totalorder %s16, 0
    %p120 = por %p118, %p119
    %s121 = ssub.s32 %s17, %s29
    %s122 = ssub.s32 %s18, %s25
    %s123 = sor.u32 %s121, %s122
    %p124 = scmp.eq.s32.totalorder %s123, 0
    %s126 = sadd.s32 %s125, 1
    %s127 = scalar_select %p124, %s125, %s126
    %p130 = pneg %p124
    %p131 = scmp.eq.s32.totalorder %s10, 1
    %p132 = por %p130, %p131
    %p133 = scmp.ne.s32.totalorder %s125, %s128
    %p134 = scmp.eq.s32.totalorder %s10, 0
    %p135 = por %p133, %p134
    %p136 = scmp.ne.s32.totalorder %s125, %s128
    %p137 = scmp.eq.s32.totalorder %s15, 1
    %p138 = por %p136, %p137
    %p139 = scmp.ne.s32.totalorder %s128, %s129
    %p140 = scmp.eq.s32.totalorder %s15, 0
    %p141 = por %p139, %p140
    %p142 = scmp.ne.s32.totalorder %s128, %s129
    %p143 = scmp.eq.s32.totalorder %s16, 1
    %p144 = por %p142, %p143
    %p146 = scmp.ne.s32.totalorder %s129, %s145
    %p147 = scmp.eq.s32.totalorder %s16, 0
    %p148 = por %p146, %p147
    %p149 = scmp.le.s32.totalorder 1, %s10
    %p150 = scmp.lt.s32.totalorder %s10, 3
    %p151 = pnand %p149, %p150
    %p152 = pneg %p151
    // Predicated region
    $region9: #{tpu_custom_call.1} parent=5 // pred_check
      _
    $region10: #{tpu_custom_call.1} parent=5 // pred_check_branch
      %154 = sbr.rel (%p151) target = $region12
    $region11: #{tpu_custom_call.1} parent=5 // pred_region
      %s155 = ssub.s32 %s10, 1
      // Predicated region
      $region13: #{tpu_custom_call.1} parent=11 // pred_check
        %p156 = pneg %p71
      $region14: #{tpu_custom_call.1} parent=11 // pred_check_branch
        %158 = sbr.rel (%p156) target = $region16
      $region15: #{tpu_custom_call.1} parent=11 // pred_region
        _
      $region16: #{tpu_custom_call.1} parent=11 // pred_fallthru
        _
      // Predicated region
      $region17: #{tpu_custom_call.1} parent=11 // pred_check
        %p159 = pneg %p92
      $region18: #{tpu_custom_call.1} parent=11 // pred_check_branch
        %161 = sbr.rel (%p159) target = $region20
      $region19: #{tpu_custom_call.1} parent=11 // pred_region
        _
      $region20: #{tpu_custom_call.1} parent=11 // pred_fallthru
        _
      // Predicated region
      $region21: #{tpu_custom_call.1} parent=11 // pred_check
        %p162 = pneg %p113
      $region22: #{tpu_custom_call.1} parent=11 // pred_check_branch
        %164 = sbr.rel (%p162) target = $region24
      $region23: #{tpu_custom_call.1} parent=11 // pred_region
        _
      $region24: #{tpu_custom_call.1} parent=11 // pred_fallthru
        _
    $region12: #{tpu_custom_call.1} parent=5 // pred_fallthru
      _
    %p165 = scmp.lt.s32.totalorder %s10, 2
    // Predicated region
    $region25: #{tpu_custom_call.1} parent=5 // pred_check
      %p166 = pneg %p165
    $region26: #{tpu_custom_call.1} parent=5 // pred_check_branch
      %168 = sbr.rel (%p166) target = $region28
    $region27: #{tpu_custom_call.1} parent=5 // pred_region
      // Predicated region
      $region29: #{tpu_custom_call.1} parent=27 // pred_check
        %p169 = pneg %p44
      $region30: #{tpu_custom_call.1} parent=27 // pred_check_branch
        %171 = sbr.rel (%p169) target = $region32
      $region31: #{tpu_custom_call.1} parent=27 // pred_region
        %p172 = scmp.lt.s32.totalorder %s17, 1
        %s173 = scalar_select %p172, %s17, 1
        %p174 = scmp.lt.s32.totalorder %s18, 0
        %s175 = scalar_select %p174, %s18, 0
        %s176 = smul.addr %s173, 2
        %s177 = sadd.s32 %s175, %s176
        %s178 = smul.addr %s177, 4
        %s179 = scalar_lea.vmem %s0, %s178
      $region32: #{tpu_custom_call.1} parent=27 // pred_fallthru
        _
    $region28: #{tpu_custom_call.1} parent=5 // pred_fallthru
      _
    %p180 = scmp.le.s32.totalorder 1, %s10
    %p181 = scmp.lt.s32.totalorder %s10, 3
    %p182 = pnand %p180, %p181
    %p183 = pneg %p182
    // Predicated region
    $region33: #{tpu_custom_call.1} parent=5 // pred_check
      _
    $region34: #{tpu_custom_call.1} parent=5 // pred_check_branch
      %185 = sbr.rel (%p182) target = $region36
    $region35: #{tpu_custom_call.1} parent=5 // pred_region
      %s186 = ssub.s32 %s10, 1
      %p187 = scmp.lt.s32.totalorder %s19, 1
      %s188 = scalar_select %p187, %s19, 1
      %p189 = scmp.lt.s32.totalorder %s20, 0
      %s190 = scalar_select %p189, %s20, 0
      %s191 = smul.addr %s188, 2
      %s192 = sadd.s32 %s190, %s191
      %s193 = smul.addr %s192, 4
      %s194 = scalar_lea.vmem %s0, %s193
      %p195 = pneg %p50
      %p196 = pneg %p47
      %p197 = pneg %p71
      %p198 = pneg %p68
      %p199 = pneg %p92
      %p200 = pneg %p89
      %p201 = pneg %p113
      %p202 = pneg %p110
      %p203 = pneg %p141
      %p204 = pneg %p138
      %p205 = scmp.lt.s32.totalorder %s19, 1
      %s206 = scalar_select %p205, %s19, 1
      %p207 = scmp.lt.s32.totalorder %s20, 0
      %s208 = scalar_select %p207, %s20, 0
      %s209 = smul.addr %s206, 16
      %s210 = sadd.s32 %s208, %s209
      %s211 = smul.addr %s210, 8
      %s212 = scalar_lea.vmem %s4, %s211
      %p213 = scmp.lt.s32.totalorder %s19, 1
      %s214 = scalar_select %p213, %s19, 1
      %p215 = scmp.lt.s32.totalorder %s20, 0
      %s216 = scalar_select %p215, %s20, 0
      %s217 = smul.addr %s214, 2
      %s218 = sadd.s32 %s216, %s217
      %s219 = smul.addr %s218, 4
      %s220 = scalar_lea.vmem %s0, %s219
      %p221 = scmp.lt.s32.totalorder %s19, 1
      %s222 = scalar_select %p221, %s19, 1
      %p223 = scmp.lt.s32.totalorder %s20, 0
      %s224 = scalar_select %p223, %s20, 0
      %s225 = smul.addr %s222, 16
      %s226 = sadd.s32 %s224, %s225
      %s227 = smul.addr %s226, 8
      %s228 = scalar_lea.vmem %s4, %s227
      %v230 = vld [vmem:[%s220] sm:$0xf]
      %v231 = vld [vmem:[%s220 + $0x4] sm:$0xf]
      %v232 = vunpack.c.l.bf16 %v230
      %v233 = vunpack.c.l.bf16 %v231
      %v234 = vld [vmem:[%s1] sm:$0xff]
      %v235 = vld [vmem:[%s1 + $0x8] sm:$0xff]
      %237 = vset.pattern.permute.xlu0 0
      %238 = vperm.xlu0 %237, %v234
      %v239 = vpop.permute.xlu0 %238
      %242 = vset.pattern.permute.xlu0 0
      %243 = vperm.xlu0 %242, %v235
      %v244 = vpop.permute.xlu0 %243
      %v246 = vmul.f32 %v232, %v239
      %v247 = vmul.f32 %v233, %v244
      %v248 = vld [vmem:[%s2] sm:$0xff]
      %v249 = vld [vmem:[%s2 + $0x8] sm:$0xff]
      %251 = vset.pattern.permute.xlu0 0
      %252 = vperm.xlu0 %251, %v248
      %v253 = vpop.permute.xlu0 %252
      %256 = vset.pattern.permute.xlu0 0
      %257 = vperm.xlu0 %256, %v249
      %v258 = vpop.permute.xlu0 %257
      %v260 = vadd.f32 %v246, %v253
      %v261 = vadd.f32 %v247, %v258
      %v262 = vmax.f32 %v260, 0.0
      %v263 = vmax.f32 %v261, 0.0
      %v264 = vld [vmem:[%s3] sm:$0xf]
      %v265 = vld [vmem:[%s3 + $0x4] sm:$0xf]
      %v266 = vld [vmem:[%s3 + $0x8] sm:$0xf]
      %v267 = vld [vmem:[%s3 + $0xc] sm:$0xf]
      %v268 = vld [vmem:[%s3 + $0x10] sm:$0xf]
      %v269 = vld [vmem:[%s3 + $0x14] sm:$0xf]
      %v270 = vld [vmem:[%s3 + $0x18] sm:$0xf]
      %v271 = vld [vmem:[%s3 + $0x1c] sm:$0xf]
      %v272 = vld [vmem:[%s3 + $0x20] sm:$0xf]
      %v273 = vld [vmem:[%s3 + $0x24] sm:$0xf]
      %v274 = vld [vmem:[%s3 + $0x28] sm:$0xf]
      %v275 = vld [vmem:[%s3 + $0x2c] sm:$0xf]
      %v276 = vld [vmem:[%s3 + $0x30] sm:$0xf]
      %v277 = vld [vmem:[%s3 + $0x34] sm:$0xf]
      %v278 = vld [vmem:[%s3 + $0x38] sm:$0xf]
      %v279 = vld [vmem:[%s3 + $0x3c] sm:$0xf]
      %v280 = vpack.c.bf16 %v263, %v262
      %v297 = vunpack.c.l.b16 %v264
      %v298 = vunpack.c.l.b16 %v265
      %v299 = vunpack.c.l.b16 %v266
      %v300 = vunpack.c.l.b16 %v267
      %v301 = vunpack.c.l.b16 %v268
      %v302 = vunpack.c.l.b16 %v269
      %v303 = vunpack.c.l.b16 %v270
      %v304 = vunpack.c.l.b16 %v271
      %v305 = vunpack.c.l.b16 %v272
      %v306 = vunpack.c.l.b16 %v273
      %v307 = vunpack.c.l.b16 %v274
      %v308 = vunpack.c.l.b16 %v275
      %v309 = vunpack.c.l.b16 %v276
      %v310 = vunpack.c.l.b16 %v277
      %v311 = vunpack.c.l.b16 %v278
      %v312 = vunpack.c.l.b16 %v279
      %v313 = vpack.c.b16 %v298, %v297
      %v314 = vpack.c.b16 %v300, %v299
      %v315 = vpack.c.b16 %v302, %v301
      %v316 = vpack.c.b16 %v304, %v303
      %v317 = vpack.c.b16 %v306, %v305
      %v318 = vpack.c.b16 %v308, %v307
      %v319 = vpack.c.b16 %v310, %v309
      %v320 = vpack.c.b16 %v312, %v311
      %vm321 = vcmask 130048
      %v323 = vsel %vm321, %v313, 0
      %v326 = vsel %vm321, %v314, 0
      %v329 = vsel %vm321, %v315, 0
      %v332 = vsel %vm321, %v316, 0
      %v335 = vsel %vm321, %v317, 0
      %v338 = vsel %vm321, %v318, 0
      %v341 = vsel %vm321, %v319, 0
      %v344 = vsel %vm321, %v320, 0
      %346 = vmatprep.subr.bf16.mxu0 0
      %347 = vmatpush1.bf16.msra.mxu0 0
      %348 = vmatprep.subr.bf16.mxu0 0
      %349 = vmatpush1.bf16.msra.mxu0 0
      %350 = vmatprep.subr.bf16.mxu0 0
      %351 = vmatpush1.bf16.msra.mxu0 0
      %352 = vmatprep.subr.bf16.mxu0 0
      %353 = vmatpush1.bf16.msra.mxu0 0
      %354 = vmatprep.subr.bf16.mxu0 0
      %355 = vmatpush1.bf16.msra.mxu0 0
      %356 = vmatprep.subr.bf16.mxu0 0
      %357 = vmatpush1.bf16.msra.mxu0 0
      %358 = vmatprep.subr.bf16.mxu0 0
      %359 = vmatpush1.bf16.msra.mxu0 0
      %360 = vmatprep.subr.bf16.mxu0 0
      %361 = vmatpush1.bf16.msra.mxu0 %v280
      %362 = vmatprep.subr.bf16.mxu0 0
      %363 = vmatpush2.bf16.msra.mxu0 0
      %364 = vmatprep.subr.bf16.mxu0 0
      %365 = vmatpush2.bf16.msra.mxu0 0
      %366 = vmatprep.subr.bf16.mxu0 0
      %367 = vmatpush2.bf16.msra.mxu0 0
      %368 = vmatprep.subr.bf16.mxu0 0
      %369 = vmatpush2.bf16.msra.mxu0 0
      %370 = vmatprep.subr.bf16.mxu0 0
      %371 = vmatpush2.bf16.msra.mxu0 0
      %372 = vmatprep.subr.bf16.mxu0 0
      %373 = vmatpush2.bf16.msra.mxu0 0
      %374 = vmatprep.subr.bf16.mxu0 0
      %375 = vmatpush2.bf16.msra.mxu0 0
      %376 = vmatprep.subr.bf16.mxu0 0
      %377 = vmatpush2.bf16.msra.mxu0 0
      %378 = vmatprep.mubr.bf16.mxu0 0
      %379 = vmatmul.mubr.bf16.gmra.mxu0 %v323
      %v380 = vpop.f32.mrf.mxu0
      %v381 = vadd.f32 0.0, %v380
      %v382 = vpop.f32.mrf.mxu0
      %v383 = vpop.f32.mrf.mxu0
      %v384 = vadd.f32 0.0, %v383
      %v385 = vpop.f32.mrf.mxu0
      %386 = vmatprep.mubr.bf16.mxu0 0
      %387 = vmatmul.mubr.bf16.gmra.mxu0 %v326
      %v388 = vpop.f32.mrf.mxu0
      %v389 = vadd.f32 0.0, %v388
      %v390 = vpop.f32.mrf.mxu0
      %v391 = vpop.f32.mrf.mxu0
      %v392 = vadd.f32 0.0, %v391
      %v393 = vpop.f32.mrf.mxu0
      %394 = vmatprep.mubr.bf16.mxu0 0
      %395 = vmatmul.mubr.bf16.gmra.mxu0 %v329
      %v396 = vpop.f32.mrf.mxu0
      %v397 = vadd.f32 0.0, %v396
      %v398 = vpop.f32.mrf.mxu0
      %v399 = vpop.f32.mrf.mxu0
      %v400 = vadd.f32 0.0, %v399
      %v401 = vpop.f32.mrf.mxu0
      %402 = vmatprep.mubr.bf16.mxu0 0
      %403 = vmatmul.mubr.bf16.gmra.mxu0 %v332
      %v404 = vpop.f32.mrf.mxu0
      %v405 = vadd.f32 0.0, %v404
      %v406 = vpop.f32.mrf.mxu0
      %v407 = vpop.f32.mrf.mxu0
      %v408 = vadd.f32 0.0, %v407
      %v409 = vpop.f32.mrf.mxu0
      %410 = vmatprep.mubr.bf16.mxu0 0
      %411 = vmatmul.mubr.bf16.gmra.mxu0 %v335
      %v412 = vpop.f32.mrf.mxu0
      %v413 = vadd.f32 0.0, %v412
      %v414 = vpop.f32.mrf.mxu0
      %v415 = vpop.f32.mrf.mxu0
      %v416 = vadd.f32 0.0, %v415
      %v417 = vpop.f32.mrf.mxu0
      %418 = vmatprep.mubr.bf16.mxu0 0
      %419 = vmatmul.mubr.bf16.gmra.mxu0 %v338
      %v420 = vpop.f32.mrf.mxu0
      %v421 = vadd.f32 0.0, %v420
      %v422 = vpop.f32.mrf.mxu0
      %v423 = vpop.f32.mrf.mxu0
      %v424 = vadd.f32 0.0, %v423
      %v425 = vpop.f32.mrf.mxu0
      %426 = vmatprep.mubr.bf16.mxu0 0
      %427 = vmatmul.mubr.bf16.gmra.mxu0 %v341
      %v428 = vpop.f32.mrf.mxu0
      %v429 = vadd.f32 0.0, %v428
      %v430 = vpop.f32.mrf.mxu0
      %v431 = vpop.f32.mrf.mxu0
      %v432 = vadd.f32 0.0, %v431
      %v433 = vpop.f32.mrf.mxu0
      %434 = vmatprep.mubr.bf16.mxu0 0
      %435 = vmatmul.mubr.bf16.gmra.mxu0 %v344
      %v436 = vpop.f32.mrf.mxu0
      %v437 = vadd.f32 0.0, %v436
      %v438 = vpop.f32.mrf.mxu0
      %v439 = vpop.f32.mrf.mxu0
      %v440 = vadd.f32 0.0, %v439
      %v441 = vpop.f32.mrf.mxu0
      %442 = vdwg.mxu0
      %vm443 = vcmask 523264
      %444 = vst.msk [vmem:[%s228] sm:$0xff] %vm443, %v381
      %445 = vst.msk [vmem:[%s228 + $0x8] sm:$0xff] %vm443, %v384
      %446 = vst.msk [vmem:[%s228 + $0x10] sm:$0xff] %vm443, %v389
      %447 = vst.msk [vmem:[%s228 + $0x18] sm:$0xff] %vm443, %v392
      %448 = vst.msk [vmem:[%s228 + $0x20] sm:$0xff] %vm443, %v397
      %449 = vst.msk [vmem:[%s228 + $0x28] sm:$0xff] %vm443, %v400
      %450 = vst.msk [vmem:[%s228 + $0x30] sm:$0xff] %vm443, %v405
      %451 = vst.msk [vmem:[%s228 + $0x38] sm:$0xff] %vm443, %v408
      %452 = vst.msk [vmem:[%s228 + $0x40] sm:$0xff] %vm443, %v413
      %453 = vst.msk [vmem:[%s228 + $0x48] sm:$0xff] %vm443, %v416
      %454 = vst.msk [vmem:[%s228 + $0x50] sm:$0xff] %vm443, %v421
      %455 = vst.msk [vmem:[%s228 + $0x58] sm:$0xff] %vm443, %v424
      %456 = vst.msk [vmem:[%s228 + $0x60] sm:$0xff] %vm443, %v429
      %457 = vst.msk [vmem:[%s228 + $0x68] sm:$0xff] %vm443, %v432
      %458 = vst.msk [vmem:[%s228 + $0x70] sm:$0xff] %vm443, %v437
      %459 = vst.msk [vmem:[%s228 + $0x78] sm:$0xff] %vm443, %v440
      %p460 = scmp.lt.s32.totalorder %s19, 1
      %s461 = scalar_select %p460, %s19, 1
      %p462 = scmp.lt.s32.totalorder %s20, 0
      %s463 = scalar_select %p462, %s20, 0
      %s464 = smul.addr %s461, 16
      %s465 = sadd.s32 %s463, %s464
      %s466 = smul.addr %s465, 8
      %s467 = scalar_lea.vmem %s4, %s466
      // Predicated region
      $region37: #{tpu_custom_call.1} parent=35 // pred_check
        %p468 = pneg %p138
      $region38: #{tpu_custom_call.1} parent=35 // pred_check_branch
        %470 = sbr.rel (%p468) target = $region40
      $region39: #{tpu_custom_call.1} parent=35 // pred_region
        _
      $region40: #{tpu_custom_call.1} parent=35 // pred_fallthru
        _
    $region36: #{tpu_custom_call.1} parent=5 // pred_fallthru
      _
    %p471 = scmp.le.s32.totalorder 2, %s10
    // Predicated region
    $region41: #{tpu_custom_call.1} parent=5 // pred_check
      %p472 = pneg %p471
    $region42: #{tpu_custom_call.1} parent=5 // pred_check_branch
      %474 = sbr.rel (%p472) target = $region44
    $region43: #{tpu_custom_call.1} parent=5 // pred_region
      %s475 = ssub.s32 %s10, 2
      // Predicated region
      $region45: #{tpu_custom_call.1} parent=43 // pred_check
        %p476 = pneg %p144
      $region46: #{tpu_custom_call.1} parent=43 // pred_check_branch
        %478 = sbr.rel (%p476) target = $region48
      $region47: #{tpu_custom_call.1} parent=43 // pred_region
        %p479 = scmp.lt.s32.totalorder %s21, 1
        %s480 = scalar_select %p479, %s21, 1
        %p481 = scmp.lt.s32.totalorder %s22, 0
        %s482 = scalar_select %p481, %s22, 0
        %s483 = smul.addr %s480, 16
        %s484 = sadd.s32 %s482, %s483
        %s485 = smul.addr %s484, 8
        %s486 = scalar_lea.vmem %s4, %s485
      $region48: #{tpu_custom_call.1} parent=43 // pred_fallthru
        _
    $region44: #{tpu_custom_call.1} parent=5 // pred_fallthru
      _
  $region6: #{tpu_custom_call.1} parent=0 // loop_footer
    %s14 = sadd.s32 1, %s10
  $region7: #{tpu_custom_call.1} parent=0 // loop_footer_branch
    %9 = sbr.rel target = $region3
  $region8: #{tpu_custom_call.1} parent=0 // loop_exit
    _

</llo_original>
